<compile_context>
chip_gen: v6e
topology: v6e:2x2x1
jax: 0.10.0
libtpu: 0.0.40
codegen_flags: <defaults>
</compile_context>

<pallas_src>
import functools

import jax
import jax.numpy as jnp
from jax import lax
from jax.experimental import pallas as pl
from jax.experimental.pallas import tpu as pltpu


def _round_up(x, m):
    return -(-x // m) * m


@functools.lru_cache(maxsize=None)
def _vmem_limits():
    """(per-step block budget bytes, vmem_limit_bytes) derived from the chip's VMEM."""
    try:
        cap = int(pltpu.get_tpu_info().vmem_capacity_bytes)
    except Exception:
        cap = 64 << 20                       # conservative default: v7x per-core VMEM
    budget = min(max(cap // 3, 8 << 20), 40 << 20)   # ~40 MiB on 128 MiB parts, ~21 MiB on v7x
    limit = min((cap * 3) // 4, 96 << 20)
    return budget, limit


@functools.lru_cache(maxsize=None)
def _bf16_compute_ok():
    """bf16 VALU exists on v6e/v7x; keep f32 math on v5e and older generations."""
    try:
        kind = jax.devices()[0].device_kind.lower()
    except Exception:
        return True
    return not any(tag in kind for tag in ("v2", "v3", "v4", "v5"))


def _choose_tile_s(B, S, H, D, in_itemsize, budget):
    """Seq-tile length: as large as the VMEM budget allows, but with >= ~8 grid steps."""
    d_pad = _round_up(D, 128)
    h_pad = _round_up(H, 8)
    per_row = (2 * (2 * h_pad * d_pad) * in_itemsize     # qk input block (q+k slabs), double-buffered
               + 2 * (2 * h_pad * d_pad) * in_itemsize   # q + k output blocks, double-buffered
               + 3 * 2 * d_pad * 4)                      # up to 3 f32 cos/sin tables, double-buffered
    usable = max(budget - (4 << 20), 1 << 20)            # slop for chunk temps / compiler scratch
    tile = max(1, min(S, usable // per_row))
    # Enough grid steps to overlap DMA with compute and to feed both v7x TensorCores.
    min_steps = 8
    steps_per_batch = -(-min_steps // B)
    tile = min(tile, max(1, -(-S // steps_per_batch)))
    # cos/sin blocks are (tile, D): keep the sublane dim a multiple of 8 (or the full S).
    if S >= 8:
        tile = max(8, tile - tile % 8)
    else:
        tile = S
    return tile


def _choose_seq_chunk(tile_s, H, D, cdt):
    """Rows per inner chunk so one chunk (~8-16 vregs per operand) stays near the vreg file."""
    d_pad = _round_up(D, 128)
    target = 16384 if cdt == jnp.bfloat16 else 8192
    cs = max(1, min(tile_s, target // max(1, H * d_pad)))
    while tile_s % cs:                    # cs must divide the tile exactly
        cs -= 1
    return cs


def _rope_kernel(*refs, rot_half, rot, headdim, mode, cdt, cs, n_chunks):
    """One (batch, seq-tile) grid step.

    refs: qk_ref (1,T,2,H,D), cos_ref (T,D), sin1_ref (T,D),
          [sin2_ref (T,D) if mode == 'roll_partial'], q_ref (1,T,H,D), k_ref (1,T,H,D).
    The body walks the tile in `cs`-row seq chunks so each chunk's load->roll->fma->store
    stays in (or near) the vreg file instead of materializing whole-block temporaries.
    """
    if mode == "roll_partial":
        qk_ref, cos_ref, sin1_ref, sin2_ref, q_ref, k_ref = refs
    else:
        qk_ref, cos_ref, sin1_ref, q_ref, k_ref = refs
        sin2_ref = None
    rh, D = rot_half, headdim

    def chunk_body(c, carry):
        s0 = pl.multiple_of(c * cs, cs)
        sl = pl.ds(s0, cs)
        cos = cos_ref[sl, :].astype(cdt)[:, None, :]          # (cs, 1, D)
        sin1 = sin1_ref[sl, :].astype(cdt)[:, None, :]
        sin2 = None
        if sin2_ref is not None:
            sin2 = sin2_ref[sl, :].astype(cdt)[:, None, :]

        def rope(x):                                          # x: (cs, H, D) in cdt
            if mode == "roll_full":
                # rotate_half == half lane rotation (XLU slot, co-issues with VPU FMAs).
                return x * cos + pltpu.roll(x, shift=rh, axis=2) * sin1
            if mode == "roll_partial":
                # Partial rotary via two lane rotations + split-sign sin tables:
                # cols [0,rh): x1*cos - x2*sin; [rh,rot): x2*cos + x1*sin; tail passes.
                xa = pltpu.roll(x, shift=D - rh, axis=2)
                xb = pltpu.roll(x, shift=rh, axis=2)
                return x * cos + xa * sin1 + xb * sin2
            # Fallback for headdim % 128 != 0 (small/test shapes only): slice/concat.
            parts = [x[..., rh:rot], x[..., :rh]]
            if rot < D:
                parts.append(x[..., rot:])
            return x * cos + jnp.concatenate(parts, axis=-1) * sin1

        xq = qk_ref[0, sl, 0, :, :].astype(cdt)
        q_ref[0, sl, :, :] = rope(xq).astype(q_ref.dtype)
        xk = qk_ref[0, sl, 1, :, :].astype(cdt)
        k_ref[0, sl, :, :] = rope(xk).astype(k_ref.dtype)
        return carry

    lax.fori_loop(0, n_chunks, chunk_body, 0, unroll=(n_chunks <= 8))


def build_rope_tables(cos_cached, sin_cached, headdim):
    """Build full-width (max_seq_len, headdim) f32 kernel tables once (hoisted per review).

    cos_cached / sin_cached: (max_seq_len, rotary_dim/2) float16 (torch-style cache).
    """
    L, rh = cos_cached.shape
    rot = 2 * rh
    D = headdim
    assert rot <= D
    f32 = jnp.float32
    cos = cos_cached.astype(f32)          # exact: f16 -> f32
    sin = sin_cached.astype(f32)
    tail = D - rot
    cos_parts = [cos, cos] + ([jnp.ones((L, tail), f32)] if tail else [])
    cos_full = jnp.concatenate(cos_parts, axis=-1)
    if D % 128 == 0 and rot == D:
        mode = "roll_full"
        sin1 = jnp.concatenate([-sin, sin], axis=-1)
        sin2 = None
    elif D % 128 == 0:
        mode = "roll_partial"
        sin1 = jnp.concatenate([-sin, jnp.zeros((L, D - rh), f32)], axis=-1)
        sin2 = jnp.concatenate(
            [jnp.zeros((L, rh), f32), sin, jnp.zeros((L, tail), f32)], axis=-1)
    else:
        mode = "concat"   # TODO(synk): odd head dims fall back to slice/concat rotate-half
        sin_parts = [-sin, sin] + ([jnp.zeros((L, tail), f32)] if tail else [])
        sin1 = jnp.concatenate(sin_parts, axis=-1)
        sin2 = None
    return dict(mode=mode, rot_half=rh, rot=rot, cos=cos_full, sin1=sin1, sin2=sin2)


def apply_rotary_qk(qk, tables, seqlen_offset=0):
    """qk: (B, S, 2, H, D); tables: build_rope_tables(..., headdim=D).

    Returns (q, k), each (B, S, H, D) in qk.dtype (matches torch qk.split(H, dim=2)).
    """
    B, S, two, H, D = qk.shape
    assert two == 2
    mode, rh, rot = tables["mode"], tables["rot_half"], tables["rot"]
    assert tables["cos"].shape[-1] == D

    offset = jnp.asarray(seqlen_offset, dtype=jnp.int32)
    assert offset.ndim == 0, "per-batch seqlen_offsets not supported"  # TODO(synk): (B,) offsets

    win = lambda t: lax.dynamic_slice_in_dim(t, offset, S, axis=0)     # no recompile per offset
    table_windows = [win(tables["cos"]), win(tables["sin1"])]
    if mode == "roll_partial":
        table_windows.append(win(tables["sin2"]))

    # Compute dtype: bf16 activations stay bf16 on chips with a bf16 VPU (halves the
    # vreg/VMEM footprint), otherwise f32. The concat fallback keeps f32 (test shapes).
    cdt = jnp.float32
    if mode != "concat" and qk.dtype == jnp.bfloat16 and _bf16_compute_ok():
        cdt = jnp.bfloat16

    budget, vmem_limit = _vmem_limits()
    tile_s = _choose_tile_s(B, S, H, D, qk.dtype.itemsize, budget)
    cs = _choose_seq_chunk(tile_s, H, D, cdt)
    n_chunks = tile_s // cs
    grid = (B, pl.cdiv(S, tile_s))       # padded last tile; OOB writes are dropped

    kernel = functools.partial(
        _rope_kernel, rot_half=rh, rot=rot, headdim=D, mode=mode,
        cdt=cdt, cs=cs, n_chunks=n_chunks)

    in_specs = [pl.BlockSpec((1, tile_s, 2, H, D), lambda b, s: (b, s, 0, 0, 0))]
    in_specs += [pl.BlockSpec((tile_s, D), lambda b, s: (s, 0)) for _ in table_windows]
    out_specs = [pl.BlockSpec((1, tile_s, H, D), lambda b, s: (b, s, 0, 0)),
                 pl.BlockSpec((1, tile_s, H, D), lambda b, s: (b, s, 0, 0))]

    q, k = pl.pallas_call(
        kernel,
        out_shape=(jax.ShapeDtypeStruct((B, S, H, D), qk.dtype),
                   jax.ShapeDtypeStruct((B, S, H, D), qk.dtype)),
        grid_spec=pltpu.PrefetchScalarGridSpec(
            num_scalar_prefetch=0, grid=grid,
            in_specs=in_specs, out_specs=out_specs),
        compiler_params=pltpu.CompilerParams(
            dimension_semantics=("parallel", "parallel"),
            vmem_limit_bytes=vmem_limit),
    )(qk, *table_windows)
    return q, k


class RotaryEmbeddingJax:
    """Mirror of the torch RotaryEmbedding (scale_base=None, interleaved=False path)."""

    def __init__(self, dim, max_seq_len, base=10000.0, interleaved=False,
                 scale_base=None, pos_idx_in_fp32=True):
        assert not interleaved    # TODO(synk): interleaved (GPT-J) rotary not implemented
        assert scale_base is None  # TODO(synk): XPos (scale_base) path not implemented
        self.dim = dim
        self.base = float(base)
        inv_freq = 1.0 / (self.base ** (jnp.arange(0, dim, 2, dtype=jnp.float32) / dim))
        if pos_idx_in_fp32:
            t = jnp.arange(max_seq_len, dtype=jnp.float32)
        else:
            t = jnp.arange(max_seq_len, dtype=inv_freq.dtype)
        freqs = jnp.outer(t, inv_freq)                        # (max_seq_len, dim/2)
        # The torch module caches cos/sin in float16; reproduce that quantization.
        self._cos_cached = jnp.cos(freqs).astype(jnp.float16)
        self._sin_cached = jnp.sin(freqs).astype(jnp.float16)
        self._tables = {}                                     # headdim -> prebuilt tables

    def _get_tables(self, headdim):
        tbl = self._tables.get(headdim)
        if tbl is None:
            tbl = build_rope_tables(self._cos_cached, self._sin_cached, headdim)
            self._tables[headdim] = tbl
        return tbl

    def __call__(self, qk, seqlen_offset=0):
        return apply_rotary_qk(qk, self._get_tables(qk.shape[-1]), seqlen_offset)


def _reference(qk, cos_cached, sin_cached, seqlen_offset=0):
    """Pure-JAX reference (f32 math on the f16 cache), mirrors the torch semantics."""
    B, S, two, H, D = qk.shape
    rh = cos_cached.shape[-1]
    rot = 2 * rh
    cos = cos_cached[seqlen_offset:seqlen_offset + S].astype(jnp.float32)
    sin = sin_cached[seqlen_offset:seqlen_offset + S].astype(jnp.float32)
    cos = cos[None, :, None, None, :]
    sin = sin[None, :, None, None, :]
    x = qk.astype(jnp.float32)
    x1 = x[..., :rh]
    x2 = x[..., rh:rot]
    o1 = x1 * cos - x2 * sin
    o2 = x1 * sin + x2 * cos
    out = jnp.concatenate([o1, o2, x[..., rot:]], axis=-1).astype(qk.dtype)
    return out[:, :, 0], out[:, :, 1]


if __name__ == "__main__":
    def _check(batch, seqlen, nheads, headdim, rotary_dim, max_seq_len, offset, dtype,
               key, tol):
        rope = RotaryEmbeddingJax(dim=rotary_dim, max_seq_len=max_seq_len, base=10000.0)
        qk = jax.random.normal(
            key, (batch, seqlen, 2, nheads, headdim), dtype=jnp.float32).astype(dtype)
        q, k = rope(qk, seqlen_offset=offset)
        q = jax.block_until_ready(q)
        k = jax.block_until_ready(k)
        q_ref, k_ref = _reference(qk, rope._cos_cached, rope._sin_cached, offset)
        assert q.shape == (batch, seqlen, nheads, headdim)
        assert k.shape == (batch, seqlen, nheads, headdim)
        assert jnp.allclose(q.astype(jnp.float32), q_ref.astype(jnp.float32),
                            atol=tol, rtol=tol), "q mismatch"
        assert jnp.allclose(k.astype(jnp.float32), k_ref.astype(jnp.float32),
                            atol=tol, rtol=tol), "k mismatch"

    key = jax.random.PRNGKey(0)
    k1, k2, k3, k4 = jax.random.split(key, 4)
    # 1) full rotary, small head dim (slice/concat fallback path), f32
    _check(2, 8, 4, 32, 32, 16, 0, jnp.float32, k1, 1e-4)
    # 2) partial rotary on a small head dim, nonzero offset, bf16 activations
    _check(2, 8, 4, 32, 16, 16, 3, jnp.bfloat16, k2, 3e-2)
    # 3) headdim = 128, full rotary -> pltpu.roll fast path, bf16 compute on v6e/v7x
    _check(1, 16, 8, 128, 128, 32, 0, jnp.bfloat16, k3, 3e-2)
    # 4) headdim = 128, partial rotary (rot = 64) -> two-roll split-sign path, f32
    _check(1, 16, 8, 128, 64, 32, 5, jnp.float32, k4, 1e-4)

    print("KERNEL_OK")
</pallas_src>

<mosaic_0001>
module attributes {stable_mosaic.version = 11 : i64} {
  func.func @_rope_kernel(%arg0: i32, %arg1: i32, %arg2: memref<1x8x2x4x32xf32, #tpu.memory_space<vmem>>, %arg3: memref<8x32xf32, #tpu.memory_space<vmem>>, %arg4: memref<8x32xf32, #tpu.memory_space<vmem>>, %arg5: memref<1x8x4x32xf32, #tpu.memory_space<vmem>>, %arg6: memref<1x8x4x32xf32, #tpu.memory_space<vmem>>) attributes {dimension_semantics = [#tpu.dimension_semantics<parallel>, #tpu.dimension_semantics<parallel>], iteration_bounds = array<i64: 2, 1>, scalar_prefetch = 0 : i64, scratch_operands = 0 : i64, tpu.core_type = #tpu.core_type<tc>, window_params = [{transform_indices = @transform_0, window_bounds = array<i64: 1, 8, 2, 4, 32>}, {transform_indices = @transform_1, window_bounds = array<i64: 8, 32>}, {transform_indices = @transform_2, window_bounds = array<i64: 8, 32>}, {transform_indices = @transform_3, window_bounds = array<i64: 1, 8, 4, 32>}, {transform_indices = @transform_4, window_bounds = array<i64: 1, 8, 4, 32>}]} {
    %c0_i32 = arith.constant 0 : i32
    %c8_i32 = arith.constant 8 : i32
    %0 = arith.muli %c0_i32, %c8_i32 : i32
    %1 = tpu.assume_multiple %0, 8 : i32
    %2 = arith.index_cast %1 : i32 to index
    %c0 = arith.constant 0 : index
    %3 = vector.load %arg3[%2, %c0] : memref<8x32xf32, #tpu.memory_space<vmem>>, vector<8x32xf32>
    %4 = vector.shape_cast %3 : vector<8x32xf32> to vector<8x1x32xf32>
    %5 = arith.index_cast %1 : i32 to index
    %c0_0 = arith.constant 0 : index
    %6 = vector.load %arg4[%5, %c0_0] : memref<8x32xf32, #tpu.memory_space<vmem>>, vector<8x32xf32>
    %7 = vector.shape_cast %6 : vector<8x32xf32> to vector<8x1x32xf32>
    %c0_1 = arith.constant 0 : index
    %8 = arith.index_cast %1 : i32 to index
    %c0_2 = arith.constant 0 : index
    %c0_3 = arith.constant 0 : index
    %c0_4 = arith.constant 0 : index
    %9 = vector.load %arg2[%c0_1, %8, %c0_2, %c0_3, %c0_4] : memref<1x8x2x4x32xf32, #tpu.memory_space<vmem>>, vector<1x8x1x4x32xf32>
    %10 = vector.shape_cast %9 : vector<1x8x1x4x32xf32> to vector<8x4x32xf32>
    %11 = vector.extract_strided_slice %10 {offsets = [0, 0, 16], sizes = [8, 4, 16], strides = [1, 1, 1]} : vector<8x4x32xf32> to vector<8x4x16xf32>
    %12 = vector.extract_strided_slice %10 {offsets = [0, 0, 0], sizes = [8, 4, 16], strides = [1, 1, 1]} : vector<8x4x32xf32> to vector<8x4x16xf32>
    %13 = vector.broadcast %4 : vector<8x1x32xf32> to vector<8x4x32xf32>
    %14 = arith.mulf %10, %13 : vector<8x4x32xf32>
    %15 = tpu.concatenate %11, %12 in 2 : vector<8x4x16xf32>, vector<8x4x16xf32> -> vector<8x4x32xf32>
    %16 = vector.broadcast %7 : vector<8x1x32xf32> to vector<8x4x32xf32>
    %17 = arith.mulf %15, %16 : vector<8x4x32xf32>
    %18 = arith.addf %14, %17 : vector<8x4x32xf32>
    %c0_5 = arith.constant 0 : index
    %19 = arith.index_cast %1 : i32 to index
    %c0_6 = arith.constant 0 : index
    %c0_7 = arith.constant 0 : index
    %20 = vector.load %arg5[%c0_5, %19, %c0_6, %c0_7] : memref<1x8x4x32xf32, #tpu.memory_space<vmem>>, vector<1x8x4x32xf32>
    %21 = vector.shape_cast %20 : vector<1x8x4x32xf32> to vector<8x4x32xf32>
    %22 = vector.shape_cast %18 : vector<8x4x32xf32> to vector<1x8x4x32xf32>
    tpu.vector_store %arg5[%c0_5, %19, %c0_6, %c0_7], %22 {strides = array<i32>} : memref<1x8x4x32xf32, #tpu.memory_space<vmem>>, vector<1x8x4x32xf32>,
    %c0_8 = arith.constant 0 : index
    %23 = arith.index_cast %1 : i32 to index
    %c1 = arith.constant 1 : index
    %c0_9 = arith.constant 0 : index
    %c0_10 = arith.constant 0 : index
    %24 = vector.load %arg2[%c0_8, %23, %c1, %c0_9, %c0_10] : memref<1x8x2x4x32xf32, #tpu.memory_space<vmem>>, vector<1x8x1x4x32xf32>
    %25 = vector.shape_cast %24 : vector<1x8x1x4x32xf32> to vector<8x4x32xf32>
    %26 = vector.extract_strided_slice %25 {offsets = [0, 0, 16], sizes = [8, 4, 16], strides = [1, 1, 1]} : vector<8x4x32xf32> to vector<8x4x16xf32>
    %27 = vector.extract_strided_slice %25 {offsets = [0, 0, 0], sizes = [8, 4, 16], strides = [1, 1, 1]} : vector<8x4x32xf32> to vector<8x4x16xf32>
    %28 = vector.broadcast %4 : vector<8x1x32xf32> to vector<8x4x32xf32>
    %29 = arith.mulf %25, %28 : vector<8x4x32xf32>
    %30 = tpu.concatenate %26, %27 in 2 : vector<8x4x16xf32>, vector<8x4x16xf32> -> vector<8x4x32xf32>
    %31 = vector.broadcast %7 : vector<8x1x32xf32> to vector<8x4x32xf32>
    %32 = arith.mulf %30, %31 : vector<8x4x32xf32>
    %33 = arith.addf %29, %32 : vector<8x4x32xf32>
    %c0_11 = arith.constant 0 : index
    %34 = arith.index_cast %1 : i32 to index
    %c0_12 = arith.constant 0 : index
    %c0_13 = arith.constant 0 : index
    %35 = vector.load %arg6[%c0_11, %34, %c0_12, %c0_13] : memref<1x8x4x32xf32, #tpu.memory_space<vmem>>, vector<1x8x4x32xf32>
    %36 = vector.shape_cast %35 : vector<1x8x4x32xf32> to vector<8x4x32xf32>
    %37 = vector.shape_cast %33 : vector<8x4x32xf32> to vector<1x8x4x32xf32>
    tpu.vector_store %arg6[%c0_11, %34, %c0_12, %c0_13], %37 {strides = array<i32>} : memref<1x8x4x32xf32, #tpu.memory_space<vmem>>, vector<1x8x4x32xf32>,
    %c1_i32 = arith.constant 1 : i32
    return
  }
  func.func @transform_0(%arg0: i32, %arg1: i32) -> (i32, i32, i32, i32, i32) {
    %c0_i32 = arith.constant 0 : i32
    %c0_i32_0 = arith.constant 0 : i32
    %c0_i32_1 = arith.constant 0 : i32
    %c0_i32_2 = arith.constant 0 : i32
    return %arg0, %arg1, %c0_i32, %c0_i32_0, %c0_i32_1 : i32, i32, i32, i32, i32
  }
  func.func @transform_1(%arg0: i32, %arg1: i32) -> (i32, i32) {
    %c0_i32 = arith.constant 0 : i32
    %c0_i32_0 = arith.constant 0 : i32
    return %arg1, %c0_i32 : i32, i32
  }
  func.func @transform_2(%arg0: i32, %arg1: i32) -> (i32, i32) {
    %c0_i32 = arith.constant 0 : i32
    %c0_i32_0 = arith.constant 0 : i32
    return %arg1, %c0_i32 : i32, i32
  }
  func.func @transform_3(%arg0: i32, %arg1: i32) -> (i32, i32, i32, i32) {
    %c0_i32 = arith.constant 0 : i32
    %c0_i32_0 = arith.constant 0 : i32
    %c0_i32_1 = arith.constant 0 : i32
    return %arg0, %arg1, %c0_i32, %c0_i32_0 : i32, i32, i32, i32
  }
  func.func @transform_4(%arg0: i32, %arg1: i32) -> (i32, i32, i32, i32) {
    %c0_i32 = arith.constant 0 : i32
    %c0_i32_0 = arith.constant 0 : i32
    %c0_i32_1 = arith.constant 0 : i32
    return %arg0, %arg1, %c0_i32, %c0_i32_0 : i32, i32, i32, i32
  }
}

</mosaic_0001>

<llo_original>
// kernel: tpu_custom_call.1
$region0: #{tpu_custom_call.1}
  #allocation0 [shape = 'u32[]', space=smem, size = 0x4, offset = 0x4, fixed_abs, tag = 'smem constant byte address 0x4 - core index']
  #allocation1 [shape = 'u32[144,128]{1,0:T(1,128)}', space=vmem, size = 0x12000, scoped, tag = 'internal scratch']
  %s0 = inlined_call_operand.hbm [shape: f32[2,8,2,4,32], index: 0, kind: input, shape index: {}]
  %s1 = inlined_call_operand.hbm [shape: f32[8,32], index: 1, kind: input, shape index: {}]
  %s2 = inlined_call_operand.hbm [shape: f32[8,32], index: 2, kind: input, shape index: {}]
  %s3 = inlined_call_operand.hbm [shape: f32[2,8,4,32], index: 3, kind: output, shape index: {0}]
  %s4 = inlined_call_operand.hbm [shape: f32[2,8,4,32], index: 4, kind: output, shape index: {1}]
  %5 = xla_tuple %s3, %s4
  %s6 = sld [smem:[#allocation0]]
  $region65: #{tpu_custom_call.1} parent=0
    _
  %s8 = ssub.s32 1, %s6
  %s9 = scalar_select 0, %s8, %s6
  $region1: #{tpu_custom_call.1} parent=0
    #allocation2 [shape = 'u8[65536]{0}', space=vmem, size = 0x10000, scoped, tag = 'input window, operand 0']
    #allocation3 [shape = 's32[2]{0}', space=sflag, size = 0x8, scoped, tag = 'scoped memory for tpu_custom_call.1']
    #allocation4 [shape = 's32[2]{0}', space=sflag, size = 0x8, scoped, tag = 'scoped memory for tpu_custom_call.1']
    #allocation5 [shape = 'u8[4096]{0}', space=vmem, size = 0x1000, scoped, tag = 'input window, operand 1, single buffered']
    #allocation6 [shape = 's32[1]{0}', space=sflag, size = 0x4, scoped, tag = 'scoped memory for tpu_custom_call.1']
    #allocation7 [shape = 'u8[4096]{0}', space=vmem, size = 0x1000, scoped, tag = 'input window, operand 2, single buffered']
    #allocation8 [shape = 'u8[32768]{0}', space=vmem, size = 0x8000, scoped, tag = 'output window, operand 0']
    #allocation9 [shape = 'u8[32768]{0}', space=vmem, size = 0x8000, scoped, tag = 'output window, operand 1']
    #allocation10 [shape = 's32[2]{0}', space=sflag, size = 0x8, scoped, tag = 'scoped memory for tpu_custom_call.1']
    %10 = vsyncpa [#allocation3], 0
    %s11 = scalar_lea.sflag [#allocation3], 1
    %12 = vsyncpa %s11, 0
    %13 = vsyncpa [#allocation6], 0
    %14 = vsyncpa [#allocation4], 0
    %s15 = scalar_lea.sflag [#allocation4], 1
    %16 = vsyncpa %s15, 0
    %17 = vsyncpa [#allocation10], 0
    %s18 = scalar_lea.sflag [#allocation10], 1
    %19 = vsyncpa %s18, 0
    loop: start=0, step=1, limit=4
    $region2: #{tpu_custom_call.1} parent=1 // loop_pre_header
      _
    $region3: #{tpu_custom_call.1} parent=1 // loop_header
      %s21 = sphi 0, %s25
      %p22 = scmp.ge.s32.totalorder %s21, 4
      %s28 = sphi 0, %s40
      %s29 = sphi 0, %s36
      %s30 = sphi 0, %s28
      %s31 = sphi 0, %s29
      %s32 = sphi 0, %s30
      %s33 = sphi 0, %s31
      %s45 = sphi 0, %s47
      %s48 = sphi 0, %s45
      %s49 = sphi 0, %s48
      %s65 = sphi 0, %s49
      %s71 = sphi 0, %s73
      %s74 = sphi 0, %s71
      %s75 = sphi 0, %s74
      %s91 = sphi 0, %s75
      %s97 = sphi 0, %s99
      %s100 = sphi 0, %s97
      %s101 = sphi 0, %s100
      %s117 = sphi 0, %s101
      %s125 = sphi 0, %s127
      %s128 = sphi 0, %s125
      %s129 = sphi 0, %s128
      %s145 = sphi 0, %s129
      %s153 = sphi 0, %s155
      %s156 = sphi 0, %s153
      %s157 = sphi 0, %s156
      %s173 = sphi 0, %s157
    $region4: #{tpu_custom_call.1} parent=1 // loop_header_branch
      %24 = sbr.rel (%p22) target = $region8
    $region5: #{tpu_custom_call.1} parent=1 // loop_body
      %s26 = ssub.s32 %s21, 1
      %s27 = ssub.s32 %s21, 2
      %s34 = sadd.s32 1, %s29
      %p35 = scmp.ge.s32.totalorder %s34, 1
      %s36 = scalar_select %p35, 0, %s34
      %s37 = sadd.s32 1, %s28
      %s38 = scalar_select %p35, %s37, %s28
      %p39 = scmp.ge.s32.totalorder %s38, 2
      %s40 = scalar_select %p39, 0, %s38
      %s41 = ssub.s32 %s28, %s40
      %s42 = ssub.s32 %s29, %s36
      %s43 = sor.u32 %s41, %s42
      %p44 = scmp.eq.s32.totalorder %s43, 0
      %s46 = sadd.s32 %s45, 1
      %s47 = scalar_select %p44, %s45, %s46
      %p50 = pneg %p44
      %p51 = scmp.eq.s32.totalorder %s21, 1
      %p52 = por %p50, %p51
      %p53 = scmp.ne.s32.totalorder %s45, %s48
      %p54 = scmp.eq.s32.totalorder %s21, 0
      %p55 = por %p53, %p54
      %p56 = scmp.ne.s32.totalorder %s45, %s48
      %p57 = scmp.eq.s32.totalorder %s26, 1
      %p58 = por %p56, %p57
      %p59 = scmp.ne.s32.totalorder %s48, %s49
      %p60 = scmp.eq.s32.totalorder %s26, 0
      %p61 = por %p59, %p60
      %p62 = scmp.ne.s32.totalorder %s48, %s49
      %p63 = scmp.eq.s32.totalorder %s27, 1
      %p64 = por %p62, %p63
      %p66 = scmp.ne.s32.totalorder %s49, %s65
      %p67 = scmp.eq.s32.totalorder %s27, 0
      %p68 = por %p66, %p67
      %s69 = ssub.s32 %s29, %s36
      %p70 = scmp.eq.s32.totalorder %s69, 0
      %s72 = sadd.s32 %s71, 1
      %s73 = scalar_select %p70, %s71, %s72
      %p76 = pneg %p70
      %p77 = scmp.eq.s32.totalorder %s21, 1
      %p78 = por %p76, %p77
      %p79 = scmp.ne.s32.totalorder %s71, %s74
      %p80 = scmp.eq.s32.totalorder %s21, 0
      %p81 = por %p79, %p80
      %p82 = scmp.ne.s32.totalorder %s71, %s74
      %p83 = scmp.eq.s32.totalorder %s26, 1
      %p84 = por %p82, %p83
      %p85 = scmp.ne.s32.totalorder %s74, %s75
      %p86 = scmp.eq.s32.totalorder %s26, 0
      %p87 = por %p85, %p86
      %p88 = scmp.ne.s32.totalorder %s74, %s75
      %p89 = scmp.eq.s32.totalorder %s27, 1
      %p90 = por %p88, %p89
      %p92 = scmp.ne.s32.totalorder %s75, %s91
      %p93 = scmp.eq.s32.totalorder %s27, 0
      %p94 = por %p92, %p93
      %s95 = ssub.s32 %s29, %s36
      %p96 = scmp.eq.s32.totalorder %s95, 0
      %s98 = sadd.s32 %s97, 1
      %s99 = scalar_select %p96, %s97, %s98
      %p102 = pneg %p96
      %p103 = scmp.eq.s32.totalorder %s21, 1
      %p104 = por %p102, %p103
      %p105 = scmp.ne.s32.totalorder %s97, %s100
      %p106 = scmp.eq.s32.totalorder %s21, 0
      %p107 = por %p105, %p106
      %p108 = scmp.ne.s32.totalorder %s97, %s100
      %p109 = scmp.eq.s32.totalorder %s26, 1
      %p110 = por %p108, %p109
      %p111 = scmp.ne.s32.totalorder %s100, %s101
      %p112 = scmp.eq.s32.totalorder %s26, 0
      %p113 = por %p111, %p112
      %p114 = scmp.ne.s32.totalorder %s100, %s101
      %p115 = scmp.eq.s32.totalorder %s27, 1
      %p116 = por %p114, %p115
      %p118 = scmp.ne.s32.totalorder %s101, %s117
      %p119 = scmp.eq.s32.totalorder %s27, 0
      %p120 = por %p118, %p119
      %s121 = ssub.s32 %s28, %s40
      %s122 = ssub.s32 %s29, %s36
      %s123 = sor.u32 %s121, %s122
      %p124 = scmp.eq.s32.totalorder %s123, 0
      %s126 = sadd.s32 %s125, 1
      %s127 = scalar_select %p124, %s125, %s126
      %p130 = pneg %p124
      %p131 = scmp.eq.s32.totalorder %s21, 1
      %p132 = por %p130, %p131
      %p133 = scmp.ne.s32.totalorder %s125, %s128
      %p134 = scmp.eq.s32.totalorder %s21, 0
      %p135 = por %p133, %p134
      %p136 = scmp.ne.s32.totalorder %s125, %s128
      %p137 = scmp.eq.s32.totalorder %s26, 1
      %p138 = por %p136, %p137
      %p139 = scmp.ne.s32.totalorder %s128, %s129
      %p140 = scmp.eq.s32.totalorder %s26, 0
      %p141 = por %p139, %p140
      %p142 = scmp.ne.s32.totalorder %s128, %s129
      %p143 = scmp.eq.s32.totalorder %s27, 1
      %p144 = por %p142, %p143
      %p146 = scmp.ne.s32.totalorder %s129, %s145
      %p147 = scmp.eq.s32.totalorder %s27, 0
      %p148 = por %p146, %p147
      %s149 = ssub.s32 %s28, %s40
      %s150 = ssub.s32 %s29, %s36
      %s151 = sor.u32 %s149, %s150
      %p152 = scmp.eq.s32.totalorder %s151, 0
      %s154 = sadd.s32 %s153, 1
      %s155 = scalar_select %p152, %s153, %s154
      %p158 = pneg %p152
      %p159 = scmp.eq.s32.totalorder %s21, 1
      %p160 = por %p158, %p159
      %p161 = scmp.ne.s32.totalorder %s153, %s156
      %p162 = scmp.eq.s32.totalorder %s21, 0
      %p163 = por %p161, %p162
      %p164 = scmp.ne.s32.totalorder %s153, %s156
      %p165 = scmp.eq.s32.totalorder %s26, 1
      %p166 = por %p164, %p165
      %p167 = scmp.ne.s32.totalorder %s156, %s157
      %p168 = scmp.eq.s32.totalorder %s26, 0
      %p169 = por %p167, %p168
      %p170 = scmp.ne.s32.totalorder %s156, %s157
      %p171 = scmp.eq.s32.totalorder %s27, 1
      %p172 = por %p170, %p171
      %p174 = scmp.ne.s32.totalorder %s157, %s173
      %p175 = scmp.eq.s32.totalorder %s27, 0
      %p176 = por %p174, %p175
      %p177 = scmp.le.s32.totalorder 1, %s21
      %p178 = scmp.lt.s32.totalorder %s21, 3
      %p179 = pnand %p177, %p178
      %p180 = pneg %p179
      // Predicated region
      $region9: #{tpu_custom_call.1} parent=5 // pred_check
        _
      $region10: #{tpu_custom_call.1} parent=5 // pred_check_branch
        %182 = sbr.rel (%p179) target = $region12
      $region11: #{tpu_custom_call.1} parent=5 // pred_region
        %s183 = ssub.s32 %s21, 1
        // Predicated region
        $region13: #{tpu_custom_call.1} parent=11 // pred_check
          %p184 = pneg %p87
        $region14: #{tpu_custom_call.1} parent=11 // pred_check_branch
          %186 = sbr.rel (%p184) target = $region16
        $region15: #{tpu_custom_call.1} parent=11 // pred_region
          %s188 = ssub.s32 128, 128
          %189 = vsyncadd [#allocation6], %s188
          %s190 = smul.addr %s31, 128
          %s191 = scalar_lea.hbm %s1, %s190
          %s193 = sshll.u32 [#allocation5], 4
          %s194 = int_to_ptr.vmem [resolvable:$true] %s193
          %196 = dma.hbm_to_vmem [thread:$0]  %s191, 128, %s194, [#allocation6]
        $region16: #{tpu_custom_call.1} parent=11 // pred_fallthru
          _
        // Predicated region
        $region17: #{tpu_custom_call.1} parent=11 // pred_check
          %p197 = pneg %p113
        $region18: #{tpu_custom_call.1} parent=11 // pred_check_branch
          %199 = sbr.rel (%p197) target = $region20
        $region19: #{tpu_custom_call.1} parent=11 // pred_region
          %s201 = ssub.s32 128, 128
          %202 = vsyncadd [#allocation6], %s201
          %s203 = smul.addr %s31, 128
          %s204 = scalar_lea.hbm %s2, %s203
          %s206 = sshll.u32 [#allocation7], 4
          %s207 = int_to_ptr.vmem [resolvable:$true] %s206
          %209 = dma.hbm_to_vmem [thread:$0]  %s204, 128, %s207, [#allocation6]
        $region20: #{tpu_custom_call.1} parent=11 // pred_fallthru
          _
      $region12: #{tpu_custom_call.1} parent=5 // pred_fallthru
        _
      %p210 = scmp.lt.s32.totalorder %s21, 2
      // Predicated region
      $region21: #{tpu_custom_call.1} parent=5 // pred_check
        %p211 = pneg %p210
      $region22: #{tpu_custom_call.1} parent=5 // pred_check_branch
        %213 = sbr.rel (%p211) target = $region24
      $region23: #{tpu_custom_call.1} parent=5 // pred_region
        // Predicated region
        $region25: #{tpu_custom_call.1} parent=23 // pred_check
          %p214 = pneg %p55
        $region26: #{tpu_custom_call.1} parent=23 // pred_check_branch
          %216 = sbr.rel (%p214) target = $region28
        $region27: #{tpu_custom_call.1} parent=23 // pred_region
          %s217 = sand.u32 %s45, 1
          %s218 = scalar_lea.sflag [#allocation3], %s217
          %s219 = sand.u32 %s45, 1
          %s220 = smul.addr %s219, 64
          %s221 = scalar_lea.vmem [#allocation2], %s220
          %s222 = smul.u32 8, %s29
          %s224 = ssub.s32 1024, 1024
          %225 = vsyncadd %s218, %s224
          %s226 = smul.addr %s222, 2
          %s227 = smul.addr %s28, 16
          %s228 = sadd.s32 %s226, %s227
          %s229 = smul.addr %s228, 64
          %s230 = scalar_lea.hbm %s0, %s229
          %s231 = sshll.u32 %s221, 4
          %s232 = int_to_ptr.vmem [resolvable:$true] %s231
          %237 = dma.hbm_to_vmem [thread:$0]  %s230, 1024, %s232, %s218, 64, 64, 4
        $region28: #{tpu_custom_call.1} parent=23 // pred_fallthru
          _
      $region24: #{tpu_custom_call.1} parent=5 // pred_fallthru
        _
      %p238 = scmp.le.s32.totalorder 1, %s21
      %p239 = scmp.lt.s32.totalorder %s21, 3
      %p240 = pnand %p238, %p239
      %p241 = pneg %p240
      // Predicated region
      $region29: #{tpu_custom_call.1} parent=5 // pred_check
        _
      $region30: #{tpu_custom_call.1} parent=5 // pred_check_branch
        %243 = sbr.rel (%p240) target = $region32
      $region31: #{tpu_custom_call.1} parent=5 // pred_region
        %s244 = ssub.s32 %s21, 1
        %s245 = sand.u32 %s48, 1
        %s246 = scalar_lea.sflag [#allocation3], %s245
        %s247 = sand.u32 %s48, 1
        %s248 = smul.addr %s247, 64
        %s249 = scalar_lea.vmem [#allocation2], %s248
        // Predicated region
        $region33: #{tpu_custom_call.1} parent=31 // pred_check
          %p250 = pneg %p61
        $region34: #{tpu_custom_call.1} parent=31 // pred_check_branch
          %252 = sbr.rel (%p250) target = $region36
        $region35: #{tpu_custom_call.1} parent=31 // pred_region
          %253 = dma.done %s246, 1024
        $region36: #{tpu_custom_call.1} parent=31 // pred_fallthru
          _
        // Predicated region
        $region37: #{tpu_custom_call.1} parent=31 // pred_check
          %p254 = pneg %p87
        $region38: #{tpu_custom_call.1} parent=31 // pred_check_branch
          %256 = sbr.rel (%p254) target = $region40
        $region39: #{tpu_custom_call.1} parent=31 // pred_region
          %257 = dma.done [#allocation6], 128
        $region40: #{tpu_custom_call.1} parent=31 // pred_fallthru
          _
        // Predicated region
        $region41: #{tpu_custom_call.1} parent=31 // pred_check
          %p258 = pneg %p113
        $region42: #{tpu_custom_call.1} parent=31 // pred_check_branch
          %260 = sbr.rel (%p258) target = $region44
        $region43: #{tpu_custom_call.1} parent=31 // pred_region
          %261 = dma.done [#allocation6], 128
        $region44: #{tpu_custom_call.1} parent=31 // pred_fallthru
          _
        %s262 = sand.u32 %s48, 1
        %s263 = scalar_lea.sflag [#allocation3], %s262
        %s264 = sand.u32 %s48, 1
        %s265 = smul.addr %s264, 64
        %s266 = scalar_lea.vmem [#allocation2], %s265
        %p267 = pneg %p61
        %p268 = pneg %p58
        %p269 = pneg %p87
        %p270 = pneg %p84
        %p271 = pneg %p113
        %p272 = pneg %p110
        %p273 = pneg %p141
        %p274 = pneg %p138
        %s275 = sand.u32 %s128, 1
        %s276 = scalar_lea.sflag [#allocation4], %s275
        %s277 = sand.u32 %s128, 1
        %s278 = smul.addr %s277, 32
        %s279 = scalar_lea.vmem [#allocation8], %s278
        %p280 = pneg %p169
        %p281 = pneg %p166
        %s282 = sand.u32 %s156, 1
        %s283 = scalar_lea.sflag [#allocation10], %s282
        %s284 = sand.u32 %s156, 1
        %s285 = smul.addr %s284, 32
        %s286 = scalar_lea.vmem [#allocation9], %s285
        %s287 = smul.u32 8, %s31
        %s288 = smul.u32 8, %s31
        %s289 = smul.u32 8, %s31
        %v290 = vld [vmem:[#allocation5] sm:$0xff]
        %v292 = vcombine.high %v290, %v290
        %v294 = vunpack.c.l.s4 1966171168
        %v295 = vunpack.c.0.s8 %v294
        %v296 = vlaneseq
        %v297 = vshrl.u32 %v296, 7
        %v298 = vsub.s32 %v295, %v297
        %v299 = vrot.slane %v290, %v298
        %v301 = vunpack.c.l.s4 1966171168
        %v302 = vunpack.c.0.s8 %v301
        %v303 = vlaneseq
        %v304 = vshrl.u32 %v303, 7
        %v305 = vsub.s32 %v302, %v304
        %v306 = vrot.slane %v292, %v305
        %v307 = vcombine.high %v299, %v299
        %v308 = vcombine.high %v306, %v306
        %v310 = vunpack.c.l.s4 1966171168
        %v311 = vunpack.c.0.s8 %v310
        %v312 = vlaneseq
        %v313 = vshrl.u32 %v312, 7
        %v314 = vsub.s32 %v311, %v313
        %v315 = vrot.slane %v299, %v314
        %v317 = vunpack.c.l.s4 1966171168
        %v318 = vunpack.c.0.s8 %v317
        %v319 = vlaneseq
        %v320 = vshrl.u32 %v319, 7
        %v321 = vsub.s32 %v318, %v320
        %v322 = vrot.slane %v306, %v321
        %v324 = vunpack.c.l.s4 1966171168
        %v325 = vunpack.c.0.s8 %v324
        %v326 = vlaneseq
        %v327 = vshrl.u32 %v326, 7
        %v328 = vsub.s32 %v325, %v327
        %v329 = vrot.slane %v307, %v328
        %v331 = vunpack.c.l.s4 1966171168
        %v332 = vunpack.c.0.s8 %v331
        %v333 = vlaneseq
        %v334 = vshrl.u32 %v333, 7
        %v335 = vsub.s32 %v332, %v334
        %v336 = vrot.slane %v308, %v335
        %v337 = vcombine.high %v315, %v315
        %v338 = vcombine.high %v322, %v322
        %v339 = vcombine.high %v329, %v329
        %v340 = vcombine.high %v336, %v336
        %v341 = vld [vmem:[#allocation7] sm:$0xff]
        %v343 = vcombine.high %v341, %v341
        %v345 = vunpack.c.l.s4 1966171168
        %v346 = vunpack.c.0.s8 %v345
        %v347 = vlaneseq
        %v348 = vshrl.u32 %v347, 7
        %v349 = vsub.s32 %v346, %v348
        %v350 = vrot.slane %v341, %v349
        %v352 = vunpack.c.l.s4 1966171168
        %v353 = vunpack.c.0.s8 %v352
        %v354 = vlaneseq
        %v355 = vshrl.u32 %v354, 7
        %v356 = vsub.s32 %v353, %v355
        %v357 = vrot.slane %v343, %v356
        %v358 = vcombine.high %v350, %v350
        %v359 = vcombine.high %v357, %v357
        %v361 = vunpack.c.l.s4 1966171168
        %v362 = vunpack.c.0.s8 %v361
        %v363 = vlaneseq
        %v364 = vshrl.u32 %v363, 7
        %v365 = vsub.s32 %v362, %v364
        %v366 = vrot.slane %v350, %v365
        %v368 = vunpack.c.l.s4 1966171168
        %v369 = vunpack.c.0.s8 %v368
        %v370 = vlaneseq
        %v371 = vshrl.u32 %v370, 7
        %v372 = vsub.s32 %v369, %v371
        %v373 = vrot.slane %v357, %v372
        %v375 = vunpack.c.l.s4 1966171168
        %v376 = vunpack.c.0.s8 %v375
        %v377 = vlaneseq
        %v378 = vshrl.u32 %v377, 7
        %v379 = vsub.s32 %v376, %v378
        %v380 = vrot.slane %v358, %v379
        %v382 = vunpack.c.l.s4 1966171168
        %v383 = vunpack.c.0.s8 %v382
        %v384 = vlaneseq
        %v385 = vshrl.u32 %v384, 7
        %v386 = vsub.s32 %v383, %v385
        %v387 = vrot.slane %v359, %v386
        %v388 = vcombine.high %v366, %v366
        %v389 = vcombine.high %v373, %v373
        %v390 = vcombine.high %v380, %v380
        %v391 = vcombine.high %v387, %v387
        %s392 = smul.u32 0, 8
        %s393 = scalar_lea.vmem %s249, %s392 [#allocation2]
        %v394 = vld [vmem:[%s393] sm:$0xf]
        %v395 = vld [vmem:[%s393 + $0x8] sm:$0xf]
        %v396 = vld [vmem:[%s393 + $0x10] sm:$0xf]
        %v397 = vld [vmem:[%s393 + $0x18] sm:$0xf]
        %v398 = vld [vmem:[%s393 + $0x20] sm:$0xf]
        %v399 = vld [vmem:[%s393 + $0x28] sm:$0xf]
        %v400 = vld [vmem:[%s393 + $0x30] sm:$0xf]
        %v401 = vld [vmem:[%s393 + $0x38] sm:$0xf]
        %v402 = vlaneseq
        %v403 = vshrl.u32 %v402, 7
        %v404 = vsub.s32 0, %v403
        %v405 = vrot.slane %v315, %v404
        %v406 = vlaneseq
        %v407 = vshrl.u32 %v406, 7
        %v408 = vsub.s32 0, %v407
        %v409 = vrot.slane %v329, %v408
        %v410 = vlaneseq
        %v411 = vshrl.u32 %v410, 7
        %v412 = vsub.s32 0, %v411
        %v413 = vrot.slane %v337, %v412
        %v414 = vlaneseq
        %v415 = vshrl.u32 %v414, 7
        %v416 = vsub.s32 0, %v415
        %v417 = vrot.slane %v339, %v416
        %v418 = vlaneseq
        %v419 = vshrl.u32 %v418, 7
        %v420 = vsub.s32 0, %v419
        %v421 = vrot.slane %v322, %v420
        %v422 = vlaneseq
        %v423 = vshrl.u32 %v422, 7
        %v424 = vsub.s32 0, %v423
        %v425 = vrot.slane %v336, %v424
        %v426 = vlaneseq
        %v427 = vshrl.u32 %v426, 7
        %v428 = vsub.s32 0, %v427
        %v429 = vrot.slane %v338, %v428
        %v430 = vlaneseq
        %v431 = vshrl.u32 %v430, 7
        %v432 = vsub.s32 0, %v431
        %v433 = vrot.slane %v340, %v432
        %v442 = vmul.f32 %v394, %v405
        %v443 = vmul.f32 %v395, %v409
        %v444 = vmul.f32 %v396, %v413
        %v445 = vmul.f32 %v397, %v417
        %v446 = vmul.f32 %v398, %v421
        %v447 = vmul.f32 %v399, %v425
        %v448 = vmul.f32 %v400, %v429
        %v449 = vmul.f32 %v401, %v433
        %458 = vrot.lane.b32.xlu0 %v394, 112
        %v459 = vpop.permute.xlu0 %458
        %460 = vrot.lane.b32.xlu0 %v395, 112
        %v461 = vpop.permute.xlu0 %460
        %462 = vrot.lane.b32.xlu0 %v396, 112
        %v463 = vpop.permute.xlu0 %462
        %464 = vrot.lane.b32.xlu0 %v397, 112
        %v465 = vpop.permute.xlu0 %464
        %466 = vrot.lane.b32.xlu0 %v398, 112
        %v467 = vpop.permute.xlu0 %466
        %468 = vrot.lane.b32.xlu0 %v399, 112
        %v469 = vpop.permute.xlu0 %468
        %470 = vrot.lane.b32.xlu0 %v400, 112
        %v471 = vpop.permute.xlu0 %470
        %472 = vrot.lane.b32.xlu0 %v401, 112
        %v473 = vpop.permute.xlu0 %472
        %482 = vrot.lane.b32.xlu0 %v394, 16
        %v483 = vpop.permute.xlu0 %482
        %484 = vrot.lane.b32.xlu0 %v395, 16
        %v485 = vpop.permute.xlu0 %484
        %486 = vrot.lane.b32.xlu0 %v396, 16
        %v487 = vpop.permute.xlu0 %486
        %488 = vrot.lane.b32.xlu0 %v397, 16
        %v489 = vpop.permute.xlu0 %488
        %490 = vrot.lane.b32.xlu0 %v398, 16
        %v491 = vpop.permute.xlu0 %490
        %492 = vrot.lane.b32.xlu0 %v399, 16
        %v493 = vpop.permute.xlu0 %492
        %494 = vrot.lane.b32.xlu0 %v400, 16
        %v495 = vpop.permute.xlu0 %494
        %496 = vrot.lane.b32.xlu0 %v401, 16
        %v497 = vpop.permute.xlu0 %496
        %vm506 = vcmask 130048
        %v507 = vsel %vm506, %v459, %v483
        %v508 = vsel %vm506, %v461, %v485
        %v509 = vsel %vm506, %v463, %v487
        %v510 = vsel %vm506, %v465, %v489
        %v511 = vsel %vm506, %v467, %v491
        %v512 = vsel %vm506, %v469, %v493
        %v513 = vsel %vm506, %v471, %v495
        %v514 = vsel %vm506, %v473, %v497
        %v515 = vlaneseq
        %v516 = vshrl.u32 %v515, 7
        %v517 = vsub.s32 0, %v516
        %v518 = vrot.slane %v366, %v517
        %v519 = vlaneseq
        %v520 = vshrl.u32 %v519, 7
        %v521 = vsub.s32 0, %v520
        %v522 = vrot.slane %v380, %v521
        %v523 = vlaneseq
        %v524 = vshrl.u32 %v523, 7
        %v525 = vsub.s32 0, %v524
        %v526 = vrot.slane %v388, %v525
        %v527 = vlaneseq
        %v528 = vshrl.u32 %v527, 7
        %v529 = vsub.s32 0, %v528
        %v530 = vrot.slane %v390, %v529
        %v531 = vlaneseq
        %v532 = vshrl.u32 %v531, 7
        %v533 = vsub.s32 0, %v532
        %v534 = vrot.slane %v373, %v533
        %v535 = vlaneseq
        %v536 = vshrl.u32 %v535, 7
        %v537 = vsub.s32 0, %v536
        %v538 = vrot.slane %v387, %v537
        %v539 = vlaneseq
        %v540 = vshrl.u32 %v539, 7
        %v541 = vsub.s32 0, %v540
        %v542 = vrot.slane %v389, %v541
        %v543 = vlaneseq
        %v544 = vshrl.u32 %v543, 7
        %v545 = vsub.s32 0, %v544
        %v546 = vrot.slane %v391, %v545
        %v555 = vmul.f32 %v507, %v518
        %v556 = vmul.f32 %v508, %v522
        %v557 = vmul.f32 %v509, %v526
        %v558 = vmul.f32 %v510, %v530
        %v559 = vmul.f32 %v511, %v534
        %v560 = vmul.f32 %v512, %v538
        %v561 = vmul.f32 %v513, %v542
        %v562 = vmul.f32 %v514, %v546
        %v563 = vadd.f32 %v442, %v555
        %v564 = vadd.f32 %v443, %v556
        %v565 = vadd.f32 %v444, %v557
        %v566 = vadd.f32 %v445, %v558
        %v567 = vadd.f32 %v446, %v559
        %v568 = vadd.f32 %v447, %v560
        %v569 = vadd.f32 %v448, %v561
        %v570 = vadd.f32 %v449, %v562
        %s571 = smul.u32 0, 4
        %s572 = scalar_lea.vmem %s279, %s571 [#allocation8]
        %vm573 = vcmask 257024
        %574 = vst.msk [vmem:[%s572] sm:$0xf] %vm573, %v563
        %575 = vst.msk [vmem:[%s572 + $0x4] sm:$0xf] %vm573, %v564
        %576 = vst.msk [vmem:[%s572 + $0x8] sm:$0xf] %vm573, %v565
        %577 = vst.msk [vmem:[%s572 + $0xc] sm:$0xf] %vm573, %v566
        %578 = vst.msk [vmem:[%s572 + $0x10] sm:$0xf] %vm573, %v567
        %579 = vst.msk [vmem:[%s572 + $0x14] sm:$0xf] %vm573, %v568
        %580 = vst.msk [vmem:[%s572 + $0x18] sm:$0xf] %vm573, %v569
        %581 = vst.msk [vmem:[%s572 + $0x1c] sm:$0xf] %vm573, %v570
        %s582 = sadd.s32 4, %s392
        %s583 = scalar_lea.vmem %s249, %s582 [#allocation2]
        %v584 = vld [vmem:[%s583] sm:$0xf]
        %v585 = vld [vmem:[%s583 + $0x8] sm:$0xf]
        %v586 = vld [vmem:[%s583 + $0x10] sm:$0xf]
        %v587 = vld [vmem:[%s583 + $0x18] sm:$0xf]
        %v588 = vld [vmem:[%s583 + $0x20] sm:$0xf]
        %v589 = vld [vmem:[%s583 + $0x28] sm:$0xf]
        %v590 = vld [vmem:[%s583 + $0x30] sm:$0xf]
        %v591 = vld [vmem:[%s583 + $0x38] sm:$0xf]
        %v592 = vmul.f32 %v584, %v405
        %v593 = vmul.f32 %v585, %v409
        %v594 = vmul.f32 %v586, %v413
        %v595 = vmul.f32 %v587, %v417
        %v596 = vmul.f32 %v588, %v421
        %v597 = vmul.f32 %v589, %v425
        %v598 = vmul.f32 %v590, %v429
        %v599 = vmul.f32 %v591, %v433
        %608 = vrot.lane.b32.xlu0 %v584, 112
        %v609 = vpop.permute.xlu0 %608
        %610 = vrot.lane.b32.xlu0 %v585, 112
        %v611 = vpop.permute.xlu0 %610
        %612 = vrot.lane.b32.xlu0 %v586, 112
        %v613 = vpop.permute.xlu0 %612
        %614 = vrot.lane.b32.xlu0 %v587, 112
        %v615 = vpop.permute.xlu0 %614
        %616 = vrot.lane.b32.xlu0 %v588, 112
        %v617 = vpop.permute.xlu0 %616
        %618 = vrot.lane.b32.xlu0 %v589, 112
        %v619 = vpop.permute.xlu0 %618
        %620 = vrot.lane.b32.xlu0 %v590, 112
        %v621 = vpop.permute.xlu0 %620
        %622 = vrot.lane.b32.xlu0 %v591, 112
        %v623 = vpop.permute.xlu0 %622
        %632 = vrot.lane.b32.xlu0 %v584, 16
        %v633 = vpop.permute.xlu0 %632
        %634 = vrot.lane.b32.xlu0 %v585, 16
        %v635 = vpop.permute.xlu0 %634
        %636 = vrot.lane.b32.xlu0 %v586, 16
        %v637 = vpop.permute.xlu0 %636
        %638 = vrot.lane.b32.xlu0 %v587, 16
        %v639 = vpop.permute.xlu0 %638
        %640 = vrot.lane.b32.xlu0 %v588, 16
        %v641 = vpop.permute.xlu0 %640
        %642 = vrot.lane.b32.xlu0 %v589, 16
        %v643 = vpop.permute.xlu0 %642
        %644 = vrot.lane.b32.xlu0 %v590, 16
        %v645 = vpop.permute.xlu0 %644
        %646 = vrot.lane.b32.xlu0 %v591, 16
        %v647 = vpop.permute.xlu0 %646
        %v656 = vsel %vm506, %v609, %v633
        %v657 = vsel %vm506, %v611, %v635
        %v658 = vsel %vm506, %v613, %v637
        %v659 = vsel %vm506, %v615, %v639
        %v660 = vsel %vm506, %v617, %v641
        %v661 = vsel %vm506, %v619, %v643
        %v662 = vsel %vm506, %v621, %v645
        %v663 = vsel %vm506, %v623, %v647
        %v664 = vmul.f32 %v656, %v518
        %v665 = vmul.f32 %v657, %v522
        %v666 = vmul.f32 %v658, %v526
        %v667 = vmul.f32 %v659, %v530
        %v668 = vmul.f32 %v660, %v534
        %v669 = vmul.f32 %v661, %v538
        %v670 = vmul.f32 %v662, %v542
        %v671 = vmul.f32 %v663, %v546
        %v672 = vadd.f32 %v592, %v664
        %v673 = vadd.f32 %v593, %v665
        %v674 = vadd.f32 %v594, %v666
        %v675 = vadd.f32 %v595, %v667
        %v676 = vadd.f32 %v596, %v668
        %v677 = vadd.f32 %v597, %v669
        %v678 = vadd.f32 %v598, %v670
        %v679 = vadd.f32 %v599, %v671
        %s680 = scalar_lea.vmem %s286, %s571 [#allocation9]
        %681 = vst.msk [vmem:[%s680] sm:$0xf] %vm573, %v672
        %682 = vst.msk [vmem:[%s680 + $0x4] sm:$0xf] %vm573, %v673
        %683 = vst.msk [vmem:[%s680 + $0x8] sm:$0xf] %vm573, %v674
        %684 = vst.msk [vmem:[%s680 + $0xc] sm:$0xf] %vm573, %v675
        %685 = vst.msk [vmem:[%s680 + $0x10] sm:$0xf] %vm573, %v676
        %686 = vst.msk [vmem:[%s680 + $0x14] sm:$0xf] %vm573, %v677
        %687 = vst.msk [vmem:[%s680 + $0x18] sm:$0xf] %vm573, %v678
        %688 = vst.msk [vmem:[%s680 + $0x1c] sm:$0xf] %vm573, %v679
        %s689 = sand.u32 %s128, 1
        %s690 = scalar_lea.sflag [#allocation4], %s689
        %s691 = sand.u32 %s128, 1
        %s692 = smul.addr %s691, 32
        %s693 = scalar_lea.vmem [#allocation8], %s692
        %s694 = sand.u32 %s156, 1
        %s695 = scalar_lea.sflag [#allocation10], %s694
        %s696 = sand.u32 %s156, 1
        %s697 = smul.addr %s696, 32
        %s698 = scalar_lea.vmem [#allocation9], %s697
        // Predicated region
        $region45: #{tpu_custom_call.1} parent=31 // pred_check
          %p699 = pneg %p138
        $region46: #{tpu_custom_call.1} parent=31 // pred_check_branch
          %701 = sbr.rel (%p699) target = $region48
        $region47: #{tpu_custom_call.1} parent=31 // pred_region
          %s702 = smul.u32 8, %s31
          %s704 = ssub.s32 512, 512
          %705 = vsyncadd %s690, %s704
          %s706 = smul.addr %s30, 8
          %s707 = sadd.s32 %s702, %s706
          %s708 = smul.addr %s707, 64
          %s709 = scalar_lea.hbm %s3, %s708
          %s710 = sshll.u32 %s693, 4
          %s711 = int_to_ptr.vmem [resolvable:$true] %s710
          %716 = dma.vmem_to_hbm [thread:$0]  %s711, 512, %s709, %s690, 64, 64, 4
        $region48: #{tpu_custom_call.1} parent=31 // pred_fallthru
          _
        // Predicated region
        $region49: #{tpu_custom_call.1} parent=31 // pred_check
          %p717 = pneg %p166
        $region50: #{tpu_custom_call.1} parent=31 // pred_check_branch
          %719 = sbr.rel (%p717) target = $region52
        $region51: #{tpu_custom_call.1} parent=31 // pred_region
          %s720 = smul.u32 8, %s31
          %s722 = ssub.s32 512, 512
          %723 = vsyncadd %s695, %s722
          %s724 = smul.addr %s30, 8
          %s725 = sadd.s32 %s720, %s724
          %s726 = smul.addr %s725, 64
          %s727 = scalar_lea.hbm %s4, %s726
          %s728 = sshll.u32 %s698, 4
          %s729 = int_to_ptr.vmem [resolvable:$true] %s728
          %734 = dma.vmem_to_hbm [thread:$0]  %s729, 512, %s727, %s695, 64, 64, 4
        $region52: #{tpu_custom_call.1} parent=31 // pred_fallthru
          _
      $region32: #{tpu_custom_call.1} parent=5 // pred_fallthru
        _
      %p735 = scmp.le.s32.totalorder 2, %s21
      // Predicated region
      $region53: #{tpu_custom_call.1} parent=5 // pred_check
        %p736 = pneg %p735
      $region54: #{tpu_custom_call.1} parent=5 // pred_check_branch
        %738 = sbr.rel (%p736) target = $region56
      $region55: #{tpu_custom_call.1} parent=5 // pred_region
        %s739 = ssub.s32 %s21, 2
        // Predicated region
        $region57: #{tpu_custom_call.1} parent=55 // pred_check
          %p740 = pneg %p144
        $region58: #{tpu_custom_call.1} parent=55 // pred_check_branch
          %742 = sbr.rel (%p740) target = $region60
        $region59: #{tpu_custom_call.1} parent=55 // pred_region
          %s743 = sand.u32 %s129, 1
          %s744 = scalar_lea.sflag [#allocation4], %s743
          %s745 = sand.u32 %s129, 1
          %s746 = smul.addr %s745, 32
          %s747 = scalar_lea.vmem [#allocation8], %s746
          %748 = dma.done %s744, 512
        $region60: #{tpu_custom_call.1} parent=55 // pred_fallthru
          _
        // Predicated region
        $region61: #{tpu_custom_call.1} parent=55 // pred_check
          %p749 = pneg %p172
        $region62: #{tpu_custom_call.1} parent=55 // pred_check_branch
          %751 = sbr.rel (%p749) target = $region64
        $region63: #{tpu_custom_call.1} parent=55 // pred_region
          %s752 = sand.u32 %s157, 1
          %s753 = scalar_lea.sflag [#allocation10], %s752
          %s754 = sand.u32 %s157, 1
          %s755 = smul.addr %s754, 32
          %s756 = scalar_lea.vmem [#allocation9], %s755
          %757 = dma.done %s753, 512
        $region64: #{tpu_custom_call.1} parent=55 // pred_fallthru
          _
      $region56: #{tpu_custom_call.1} parent=5 // pred_fallthru
        _
    $region6: #{tpu_custom_call.1} parent=1 // loop_footer
      %s25 = sadd.s32 1, %s21
    $region7: #{tpu_custom_call.1} parent=1 // loop_footer_branch
      %20 = sbr.rel target = $region3
    $region8: #{tpu_custom_call.1} parent=1 // loop_exit
      _
    %758 = vsyncpa [#allocation3], 1
    %s759 = scalar_lea.sflag [#allocation3], 1
    %760 = vsyncpa %s759, 1
    %761 = vsyncpa [#allocation6], 1
    %762 = vsyncpa [#allocation4], 1
    %s763 = scalar_lea.sflag [#allocation4], 1
    %764 = vsyncpa %s763, 1
    %765 = vsyncpa [#allocation10], 1
    %s766 = scalar_lea.sflag [#allocation10], 1
    %767 = vsyncpa %s766, 1

</llo_original>
